<compile_context>
chip_gen: v7x
topology: tpu7x:2x2x1
jax: 0.10.0
libtpu: 0.0.40
codegen_flags: <defaults>
</compile_context>

<pallas_src>
import math
import functools

import jax
import jax.numpy as jnp
from jax.experimental import pallas as pl
from jax.experimental.pallas import tpu as pltpu

_INV_SQRT2 = 1.0 / math.sqrt(2.0)


# --------------------------------------------------------------------------- #
# Kernels
# --------------------------------------------------------------------------- #
def _mlp_kernel_fused(x_ref, w1_ref, b1_ref, w2_ref, b2_ref, o_ref):
    """num_h == 1: whole hidden dim in one shot, no accumulator scratch."""
    # fc: MXU with native-dtype operands, f32 accumulation.
    h = jnp.dot(x_ref[...], w1_ref[...], preferred_element_type=jnp.float32)
    h = h + b1_ref[...]                      # b1 pre-cast to f32 in the wrapper
    # dropout (eval mode -> identity), then exact GELU (erf form = nn.GELU default)
    h = 0.5 * h * (1.0 + jax.lax.erf(h * _INV_SQRT2))
    # proj
    out = jnp.dot(h.astype(w2_ref.dtype), w2_ref[...],
                  preferred_element_type=jnp.float32)
    o_ref[...] = (out + b2_ref[...]).astype(o_ref.dtype)


def _mlp_kernel_ksplit(x_ref, w1_ref, b1_ref, w2_ref, b2_ref, o_ref, acc_ref):
    """num_h > 1: hidden dim is the reduction axis (grid axis 1, "arbitrary")."""
    k = pl.program_id(1)

    @pl.when(k == 0)
    def _init():
        # Fold b2 into the accumulator: finalize becomes a pure cast+store.
        acc_ref[...] = jnp.broadcast_to(b2_ref[...], acc_ref.shape).astype(jnp.float32)

    h = jnp.dot(x_ref[...], w1_ref[...], preferred_element_type=jnp.float32)
    h = h + b1_ref[...]
    h = 0.5 * h * (1.0 + jax.lax.erf(h * _INV_SQRT2))
    acc_ref[...] += jnp.dot(h.astype(w2_ref.dtype), w2_ref[...],
                            preferred_element_type=jnp.float32)

    @pl.when(k == pl.num_programs(1) - 1)
    def _finalize():
        o_ref[...] = acc_ref[...].astype(o_ref.dtype)


# --------------------------------------------------------------------------- #
# Tiling / VMEM heuristics (generation-aware)
# --------------------------------------------------------------------------- #
def _round_up(n, mult):
    return -(-n // mult) * mult


def _vmem_capacity_bytes():
    try:
        return int(pltpu.get_tpu_info().vmem_capacity_bytes)
    except Exception:
        return 64 << 20  # conservative fallback (v7x-class)


def _footprint_bytes(tm, th, d_model, x_it, o_it, w_it, num_h):
    """Complete VMEM footprint model for one grid step (double-buffered operands)."""
    xo = 2 * tm * d_model * (x_it + o_it)             # x and o tiles (2-deep pipeline)
    w = 2 * (d_model * th + th * d_model) * w_it      # W1 and W2 tiles
    b = 2 * (th + d_model) * 4                        # b1 and b2 (f32)
    h_tmp = tm * th * 4                               # f32 fc/GELU intermediate
    acc = tm * d_model * 4 if num_h > 1 else 0        # f32 accumulator scratch
    return xo + w + b + h_tmp + acc


def _tile_m_candidates(m_rows, sub):
    """Row-tile candidates, largest first.

    For large M, target TM up to 1024 (weight-streaming intensity) while keeping
    at least two row tiles so both v7x TensorCores are used on the "parallel" axis.
    """
    if m_rows < 256:
        return [_round_up(m_rows, sub)]
    top = min(1024, _round_up(-(-m_rows // 2), sub))
    cands = {c for c in (top, 512, 256, 128) if c <= top}
    return sorted(cands, reverse=True)


def _tile_h_candidates(hidden):
    """Hidden-tile candidates, preference: full hidden, then 256-, then 128-multiples."""
    if hidden % 128 != 0:
        # Single full-width tile (block == full array dim). No smaller fallback
        # exists for a non-128-multiple hidden; footprint check below still applies.
        return [hidden]
    c256 = sorted((th for th in range(256, hidden, 256) if hidden % th == 0),
                  reverse=True)
    c128 = sorted((th for th in range(128, hidden, 128)
                   if hidden % th == 0 and th % 256 != 0), reverse=True)
    return [hidden] + c256 + c128


def _select_tiles(m_rows, d_model, hidden, x_it, o_it, w_it, vmem_cap,
                  tile_m=None, tile_h=None):
    """Pick (tile_m, tile_h) whose complete footprint fits ~45% of VMEM capacity."""
    budget = int(vmem_cap * 0.45)
    sub = max(8, 32 // min(x_it, o_it))  # dtype-correct sublane multiple

    tm_cands = [tile_m] if tile_m is not None else _tile_m_candidates(m_rows, sub)
    th_cands = [tile_h] if tile_h is not None else _tile_h_candidates(hidden)

    for tm in tm_cands:
        for th in th_cands:
            nh = hidden // th if hidden % th == 0 else 1
            fp = _footprint_bytes(tm, th, d_model, x_it, o_it, w_it, nh)
            if fp <= budget:
                return tm, th, fp
    # Nothing fit the soft budget: degrade to the smallest candidates rather than
    # clipping the VMEM limit below the footprint.
    tm, th = tm_cands[-1], th_cands[-1]
    nh = hidden // th if hidden % th == 0 else 1
    return tm, th, _footprint_bytes(tm, th, d_model, x_it, o_it, w_it, nh)


def _resolve_mxu_dtype(mxu_dtype, w_dtype):
    if mxu_dtype is None:
        return jnp.dtype(w_dtype)
    if isinstance(mxu_dtype, str) and mxu_dtype == "auto":
        # Feed the MXU bf16 when callers pass f32 (f32 accumulation preserved).
        return jnp.dtype(jnp.bfloat16) if jnp.dtype(w_dtype) == jnp.float32 \
            else jnp.dtype(w_dtype)
    return jnp.dtype(mxu_dtype)


# --------------------------------------------------------------------------- #
# Wrapper
# --------------------------------------------------------------------------- #
def mlp_forward(x, w1, b1, w2, b2, *, tile_m=None, tile_h=None,
                mxu_dtype="auto", vmem_limit_bytes=None):
    """x: (*, d_model) -> (*, d_model). Weights already in kernel layout
    (W1: (d_model, hidden), W2: (hidden, d_model))."""
    d_model = x.shape[-1]
    hidden = w1.shape[1]
    orig_shape = x.shape
    out_dtype = x.dtype

    # --- dtype plumbing: MXU operands in bf16 (default), f32 elsewhere --------
    mdt = _resolve_mxu_dtype(mxu_dtype, w1.dtype)
    w1c = w1.astype(mdt)
    w2c = w2.astype(mdt)
    x2d = x.reshape(-1, d_model).astype(mdt)
    b1f = b1.reshape(1, hidden).astype(jnp.float32)   # pre-cast once, not per step
    b2f = b2.reshape(1, d_model).astype(jnp.float32)

    m = x2d.shape[0]
    x_it = jnp.dtype(mdt).itemsize
    o_it = jnp.dtype(out_dtype).itemsize
    w_it = x_it

    # --- tile selection against the real VMEM capacity ------------------------
    if tile_h is not None:
        assert hidden % tile_h == 0, (hidden, tile_h)
    cap = _vmem_capacity_bytes()
    tm, th, footprint = _select_tiles(m, d_model, hidden, x_it, o_it, w_it, cap,
                                      tile_m=tile_m, tile_h=tile_h)
    num_h = hidden // th if hidden % th == 0 else 1
    if hidden % th != 0:
        th = hidden

    # --- row padding only when needed ------------------------------------------
    m_pad = _round_up(m, tm)
    if m_pad != m:
        x2d = jnp.pad(x2d, ((0, m_pad - m), (0, 0)))
    num_m = m_pad // tm

    if vmem_limit_bytes is None:
        # Headroom above the measured footprint, capped at 90% of capacity
        # (tile selection already kept footprint <= ~45% of capacity).
        vmem_limit_bytes = min(int(cap * 0.9), max(2 * footprint, 32 << 20))

    if num_h == 1:
        kernel = _mlp_kernel_fused
        grid = (num_m,)
        in_specs = [
            pl.BlockSpec((tm, d_model), lambda i: (i, 0)),        # x row tile
            pl.BlockSpec((d_model, hidden), lambda i: (0, 0)),    # full W1
            pl.BlockSpec((1, hidden), lambda i: (0, 0)),          # b1
            pl.BlockSpec((hidden, d_model), lambda i: (0, 0)),    # full W2
            pl.BlockSpec((1, d_model), lambda i: (0, 0)),         # b2
        ]
        out_specs = pl.BlockSpec((tm, d_model), lambda i: (i, 0))
        scratch_shapes = []
        dims = ("parallel",)
    else:
        kernel = _mlp_kernel_ksplit
        grid = (num_m, num_h)                                     # reduction axis last
        in_specs = [
            pl.BlockSpec((tm, d_model), lambda i, k: (i, 0)),     # x row tile (resident)
            pl.BlockSpec((d_model, th), lambda i, k: (0, k)),     # W1 hidden tile
            pl.BlockSpec((1, th), lambda i, k: (0, k)),           # b1 hidden tile
            pl.BlockSpec((th, d_model), lambda i, k: (k, 0)),     # W2 hidden tile
            pl.BlockSpec((1, d_model), lambda i, k: (0, 0)),      # b2 (full)
        ]
        out_specs = pl.BlockSpec((tm, d_model), lambda i, k: (i, 0))
        scratch_shapes = [pltpu.VMEM((tm, d_model), jnp.float32)]
        dims = ("parallel", "arbitrary")

    out2d = pl.pallas_call(
        kernel,
        out_shape=jax.ShapeDtypeStruct((m_pad, d_model), out_dtype),
        grid_spec=pltpu.PrefetchScalarGridSpec(
            num_scalar_prefetch=0,
            grid=grid,
            in_specs=in_specs,
            out_specs=out_specs,
            scratch_shapes=scratch_shapes,
        ),
        compiler_params=pltpu.CompilerParams(
            dimension_semantics=dims,
            vmem_limit_bytes=vmem_limit_bytes,
        ),
    )(x2d, w1c, b1f, w2c, b2f)

    if m_pad != m:
        out2d = out2d[:m]
    return out2d.reshape(orig_shape)


# --------------------------------------------------------------------------- #
# Init / reference
# --------------------------------------------------------------------------- #
def init_mlp_params(key, d_model, fan, dtype=jnp.float32):
    """Deterministic init matching nn.Linear's uniform(-1/sqrt(in), 1/sqrt(in))."""
    hidden = fan * d_model
    k1, k2, k3, k4 = jax.random.split(key, 4)
    lim1 = 1.0 / math.sqrt(d_model)
    lim2 = 1.0 / math.sqrt(hidden)
    # stored transposed vs PyTorch: (in_features, out_features)
    w1 = jax.random.uniform(k1, (d_model, hidden), dtype, -lim1, lim1)
    b1 = jax.random.uniform(k2, (1, hidden), dtype, -lim1, lim1)
    w2 = jax.random.uniform(k3, (hidden, d_model), dtype, -lim2, lim2)
    b2 = jax.random.uniform(k4, (1, d_model), dtype, -lim2, lim2)
    return w1, b1, w2, b2


def mlp_reference(x, w1, b1, w2, b2, mxu_dtype=None):
    """Pure-JAX reference. With mxu_dtype set it mirrors the kernel's mixed
    precision (bf16 MXU operands, f32 accumulation / bias / GELU)."""
    cast = (lambda a: a) if mxu_dtype is None else (lambda a: a.astype(mxu_dtype))
    h = jnp.dot(cast(x), cast(w1), preferred_element_type=jnp.float32)
    h = h + b1.reshape(-1).astype(jnp.float32)
    h = 0.5 * h * (1.0 + jax.lax.erf(h * _INV_SQRT2))
    out = jnp.dot(cast(h), cast(w2), preferred_element_type=jnp.float32)
    out = out + b2.reshape(-1).astype(jnp.float32)
    return out.astype(x.dtype)


if __name__ == "__main__":
    # small shapes: batch=2, seq=8, d_model=32, fan=4 (hidden=128)
    batch, seq, d_model, fan = 2, 8, 32, 4

    key = jax.random.PRNGKey(0)
    kx, kp, kx2, kp2 = jax.random.split(key, 4)
    x = jax.random.normal(kx, (batch, seq, d_model), jnp.float32)
    w1, b1, w2, b2 = init_mlp_params(kp, d_model, fan)

    # 1) Default path: f32 params fed to the MXU as bf16 (f32 accumulation).
    fwd = jax.jit(mlp_forward)
    out = jax.block_until_ready(fwd(x, w1, b1, w2, b2))
    assert out.shape == (batch, seq, d_model), out.shape
    assert out.dtype == x.dtype, out.dtype
    ref_bf16 = mlp_reference(x, w1, b1, w2, b2, mxu_dtype=jnp.bfloat16)
    err = float(jnp.max(jnp.abs(out - ref_bf16)))
    assert jnp.allclose(out, ref_bf16, atol=1e-2, rtol=1e-2), err

    # 2) Exact-f32 path (module-faithful semantics, no bf16 cast).
    fwd_f32 = jax.jit(functools.partial(mlp_forward, mxu_dtype=jnp.float32))
    out_f32 = jax.block_until_ready(fwd_f32(x, w1, b1, w2, b2))
    ref_f32 = mlp_reference(x, w1, b1, w2, b2)
    err = float(jnp.max(jnp.abs(out_f32 - ref_f32)))
    assert jnp.allclose(out_f32, ref_f32, atol=5e-4, rtol=5e-4), err

    # 3) Hidden-split (reduction grid) path: d_model=64 -> hidden=256, tile_h=128.
    d2 = 64
    x2 = jax.random.normal(kx2, (batch, seq, d2), jnp.float32)
    p2 = init_mlp_params(kp2, d2, fan)
    fwd_split = jax.jit(functools.partial(mlp_forward, tile_h=128))
    out2 = jax.block_until_ready(fwd_split(x2, *p2))
    ref2 = mlp_reference(x2, *p2, mxu_dtype=jnp.bfloat16)
    err = float(jnp.max(jnp.abs(out2 - ref2)))
    assert jnp.allclose(out2, ref2, atol=1e-2, rtol=1e-2), err

    print("KERNEL_OK")
</pallas_src>

<mosaic_0001>
module attributes {stable_mosaic.version = 11 : i64} {
  func.func @_mlp_kernel_fused(%arg0: i32, %arg1: memref<16x32xbf16, #tpu.memory_space<vmem>>, %arg2: memref<32x128xbf16, #tpu.memory_space<vmem>>, %arg3: memref<1x128xf32, #tpu.memory_space<vmem>>, %arg4: memref<128x32xbf16, #tpu.memory_space<vmem>>, %arg5: memref<1x32xf32, #tpu.memory_space<vmem>>, %arg6: memref<16x32xf32, #tpu.memory_space<vmem>>) attributes {dimension_semantics = [#tpu.dimension_semantics<parallel>], iteration_bounds = array<i64: 1>, scalar_prefetch = 0 : i64, scratch_operands = 0 : i64, tpu.core_type = #tpu.core_type<tc>, window_params = [{transform_indices = @transform_0, window_bounds = array<i64: 16, 32>}, {pipeline_mode = #tpu.pipeline_mode<synchronous>, transform_indices = @transform_1, window_bounds = array<i64: 32, 128>}, {pipeline_mode = #tpu.pipeline_mode<synchronous>, transform_indices = @transform_2, window_bounds = array<i64: 1, 128>}, {pipeline_mode = #tpu.pipeline_mode<synchronous>, transform_indices = @transform_3, window_bounds = array<i64: 128, 32>}, {pipeline_mode = #tpu.pipeline_mode<synchronous>, transform_indices = @transform_4, window_bounds = array<i64: 1, 32>}, {transform_indices = @transform_5, window_bounds = array<i64: 16, 32>}]} {
    %c0 = arith.constant 0 : index
    %c0_0 = arith.constant 0 : index
    %0 = vector.load %arg1[%c0, %c0_0] : memref<16x32xbf16, #tpu.memory_space<vmem>>, vector<16x32xbf16>
    %c0_1 = arith.constant 0 : index
    %c0_2 = arith.constant 0 : index
    %1 = vector.load %arg2[%c0_1, %c0_2] : memref<32x128xbf16, #tpu.memory_space<vmem>>, vector<32x128xbf16>
    %cst = arith.constant dense<0.000000e+00> : vector<16x128xf32>
    %2 = tpu.matmul %0, %1, %cst {dimension_numbers = #tpu.dot_dimension_numbers<[1], [0], [0], [1], [0, 0, 1, 1], [], []>} : vector<16x32xbf16>, vector<32x128xbf16>, vector<16x128xf32> -> vector<16x128xf32>
    %c0_3 = arith.constant 0 : index
    %c0_4 = arith.constant 0 : index
    %3 = vector.load %arg3[%c0_3, %c0_4] : memref<1x128xf32, #tpu.memory_space<vmem>>, vector<1x128xf32>
    %4 = vector.broadcast %3 : vector<1x128xf32> to vector<16x128xf32>
    %5 = arith.addf %2, %4 : vector<16x128xf32>
    %cst_5 = arith.constant 5.000000e-01 : f32
    %6 = vector.broadcast %cst_5 : f32 to vector<16x128xf32>
    %7 = arith.mulf %6, %5 : vector<16x128xf32>
    %cst_6 = arith.constant 0.707106769 : f32
    %8 = vector.broadcast %cst_6 : f32 to vector<16x128xf32>
    %9 = arith.mulf %5, %8 : vector<16x128xf32>
    %10 = math.erf %9 : vector<16x128xf32>
    %cst_7 = arith.constant 1.000000e+00 : f32
    %11 = vector.broadcast %cst_7 : f32 to vector<16x128xf32>
    %12 = arith.addf %11, %10 : vector<16x128xf32>
    %13 = arith.mulf %7, %12 : vector<16x128xf32>
    %14 = arith.truncf %13 : vector<16x128xf32> to vector<16x128xbf16>
    %c0_8 = arith.constant 0 : index
    %c0_9 = arith.constant 0 : index
    %15 = vector.load %arg4[%c0_8, %c0_9] : memref<128x32xbf16, #tpu.memory_space<vmem>>, vector<128x32xbf16>
    %cst_10 = arith.constant dense<0.000000e+00> : vector<16x32xf32>
    %16 = tpu.matmul %14, %15, %cst_10 {dimension_numbers = #tpu.dot_dimension_numbers<[1], [0], [0], [1], [0, 0, 1, 1], [], []>} : vector<16x128xbf16>, vector<128x32xbf16>, vector<16x32xf32> -> vector<16x32xf32>
    %c0_11 = arith.constant 0 : index
    %c0_12 = arith.constant 0 : index
    %17 = vector.load %arg5[%c0_11, %c0_12] : memref<1x32xf32, #tpu.memory_space<vmem>>, vector<1x32xf32>
    %18 = vector.broadcast %17 : vector<1x32xf32> to vector<16x32xf32>
    %19 = arith.addf %16, %18 : vector<16x32xf32>
    %c0_13 = arith.constant 0 : index
    %c0_14 = arith.constant 0 : index
    %20 = vector.load %arg6[%c0_13, %c0_14] : memref<16x32xf32, #tpu.memory_space<vmem>>, vector<16x32xf32>
    tpu.vector_store %arg6[%c0_13, %c0_14], %19 {strides = array<i32>} : memref<16x32xf32, #tpu.memory_space<vmem>>, vector<16x32xf32>,
    return
  }
  func.func @transform_0(%arg0: i32) -> (i32, i32) {
    %c0_i32 = arith.constant 0 : i32
    %c0_i32_0 = arith.constant 0 : i32
    return %arg0, %c0_i32 : i32, i32
  }
  func.func @transform_1(%arg0: i32) -> (i32, i32) {
    %c0_i32 = arith.constant 0 : i32
    %c0_i32_0 = arith.constant 0 : i32
    %c0_i32_1 = arith.constant 0 : i32
    return %c0_i32, %c0_i32_0 : i32, i32
  }
  func.func @transform_2(%arg0: i32) -> (i32, i32) {
    %c0_i32 = arith.constant 0 : i32
    %c0_i32_0 = arith.constant 0 : i32
    %c0_i32_1 = arith.constant 0 : i32
    return %c0_i32, %c0_i32_0 : i32, i32
  }
  func.func @transform_3(%arg0: i32) -> (i32, i32) {
    %c0_i32 = arith.constant 0 : i32
    %c0_i32_0 = arith.constant 0 : i32
    %c0_i32_1 = arith.constant 0 : i32
    return %c0_i32, %c0_i32_0 : i32, i32
  }
  func.func @transform_4(%arg0: i32) -> (i32, i32) {
    %c0_i32 = arith.constant 0 : i32
    %c0_i32_0 = arith.constant 0 : i32
    %c0_i32_1 = arith.constant 0 : i32
    return %c0_i32, %c0_i32_0 : i32, i32
  }
  func.func @transform_5(%arg0: i32) -> (i32, i32) {
    %c0_i32 = arith.constant 0 : i32
    %c0_i32_0 = arith.constant 0 : i32
    return %arg0, %c0_i32 : i32, i32
  }
}

</mosaic_0001>

<llo_original>
// kernel: mlp_forward.1
$region0: #{mlp_forward.1}
  #allocation0 [shape = 'u32[]', space=smem, size = 0x4, offset = 0x4, fixed_abs, tag = 'smem constant byte address 0x4 - core index']
  #allocation1 [shape = 'u32[144,128]{1,0:T(1,128)}', space=vmem, size = 0x12000, scoped, tag = 'internal scratch']
  %s0 = inlined_call_operand.vmem [shape: bf16[16,32], index: 0, kind: input, shape index: {}]
  %s1 = inlined_call_operand.vmem [shape: bf16[32,128], index: 1, kind: input, shape index: {}]
  %s2 = inlined_call_operand.vmem [shape: f32[1,128], index: 2, kind: input, shape index: {}]
  %s3 = inlined_call_operand.vmem [shape: bf16[128,32], index: 3, kind: input, shape index: {}]
  %s4 = inlined_call_operand.vmem [shape: f32[1,32], index: 4, kind: input, shape index: {}]
  %s5 = inlined_call_operand.hbm [shape: f32[16,32], index: 5, kind: output, shape index: {}]
  %s6 = sld [smem:[#allocation0]]
  $region30: #{mlp_forward.1} parent=0
    _
  %s8 = ssub.s32 1, %s6
  %s9 = scalar_select 0, %s8, %s6
  $region1: #{mlp_forward.1} parent=0
    #allocation2 [shape = 'u8[8192]{0}', space=vmem, size = 0x2000, scoped, tag = 'output window, operand 0, single buffered']
    #allocation3 [shape = 's32[1]{0}', space=sflag, size = 0x4, scoped, tag = 'scoped memory for mlp_forward.1']
    %10 = vsyncpa [#allocation3], 0
    // Predicated region
    $region2: #{mlp_forward.1} parent=1 // pred_check
      _
    $region3: #{mlp_forward.1} parent=1 // pred_check_branch
      %12 = sbr.rel (0) target = $region5
    $region4: #{mlp_forward.1} parent=1 // pred_region
      _
    $region5: #{mlp_forward.1} parent=1 // pred_fallthru
      _
    // Predicated region
    $region6: #{mlp_forward.1} parent=1 // pred_check
      _
    $region7: #{mlp_forward.1} parent=1 // pred_check_branch
      %14 = sbr.rel (0) target = $region9
    $region8: #{mlp_forward.1} parent=1 // pred_region
      _
    $region9: #{mlp_forward.1} parent=1 // pred_fallthru
      _
    // Predicated region
    $region10: #{mlp_forward.1} parent=1 // pred_check
      _
    $region11: #{mlp_forward.1} parent=1 // pred_check_branch
      %16 = sbr.rel (0) target = $region13
    $region12: #{mlp_forward.1} parent=1 // pred_region
      _
    $region13: #{mlp_forward.1} parent=1 // pred_fallthru
      _
    // Predicated region
    $region14: #{mlp_forward.1} parent=1 // pred_check
      _
    $region15: #{mlp_forward.1} parent=1 // pred_check_branch
      %18 = sbr.rel (0) target = $region17
    $region16: #{mlp_forward.1} parent=1 // pred_region
      _
    $region17: #{mlp_forward.1} parent=1 // pred_fallthru
      _
    // Predicated region
    $region18: #{mlp_forward.1} parent=1 // pred_check
      _
    $region19: #{mlp_forward.1} parent=1 // pred_check_branch
      %20 = sbr.rel (0) target = $region21
    $region20: #{mlp_forward.1} parent=1 // pred_region
      _
    $region21: #{mlp_forward.1} parent=1 // pred_fallthru
      _
    %v22 = vld [vmem:[%s0] sm:$0xf]
    %v23 = vld [vmem:[%s0 + $0x4] sm:$0xf]
    %v24 = vld [vmem:[%s1] sm:$0xf]
    %v25 = vld [vmem:[%s1 + $0x4] sm:$0xf]
    %v26 = vld [vmem:[%s1 + $0x8] sm:$0xf]
    %v27 = vld [vmem:[%s1 + $0xc] sm:$0xf]
    %v28 = vld [vmem:[%s2] sm:$0x1]
    %v30 = vlaneseq
    %v31 = vshrl.u32 %v30, 7
    %v32 = vsub.s32 0, %v31
    %v33 = vrot.slane %v28, %v32
    %v37 = vunpack.c.l.b16 %v22
    %v38 = vunpack.c.l.b16 %v23
    %v39 = vpack.c.b16 %v38, %v37
    %v44 = vunpack.c.l.b16 %v24
    %v45 = vunpack.c.l.b16 %v25
    %v46 = vunpack.c.l.b16 %v26
    %v47 = vunpack.c.l.b16 %v27
    %v48 = vpack.c.b16 %v45, %v44
    %v49 = vpack.c.b16 %v47, %v46
    %vm52 = vcmask 261120
    %v54 = vsel %vm52, %v39, 0
    %56 = vmatprep.subr.bf16.mxu0 0
    %57 = vmatpush1.bf16.msra.mxu0 %v48
    %58 = vmatprep.subr.bf16.mxu0 0
    %59 = vmatpush1.bf16.msra.mxu0 %v49
    %60 = vmatprep.subr.bf16.mxu0 0
    %61 = vmatpush1.bf16.msra.mxu0 0
    %62 = vmatprep.subr.bf16.mxu0 0
    %63 = vmatpush1.bf16.msra.mxu0 0
    %64 = vmatprep.subr.bf16.mxu0 0
    %65 = vmatpush1.bf16.msra.mxu0 0
    %66 = vmatprep.subr.bf16.mxu0 0
    %67 = vmatpush1.bf16.msra.mxu0 0
    %68 = vmatprep.subr.bf16.mxu0 0
    %69 = vmatpush1.bf16.msra.mxu0 0
    %70 = vmatprep.subr.bf16.mxu0 0
    %71 = vmatpush1.bf16.msra.mxu0 0
    %72 = vmatprep.subr.bf16.mxu0 0
    %73 = vmatpush1.bf16.msra.mxu0 0
    %74 = vmatprep.subr.bf16.mxu0 0
    %75 = vmatpush1.bf16.msra.mxu0 0
    %76 = vmatprep.subr.bf16.mxu0 0
    %77 = vmatpush1.bf16.msra.mxu0 0
    %78 = vmatprep.subr.bf16.mxu0 0
    %79 = vmatpush1.bf16.msra.mxu0 0
    %80 = vmatprep.subr.bf16.mxu0 0
    %81 = vmatpush1.bf16.msra.mxu0 0
    %82 = vmatprep.subr.bf16.mxu0 0
    %83 = vmatpush1.bf16.msra.mxu0 0
    %84 = vmatprep.subr.bf16.mxu0 0
    %85 = vmatpush1.bf16.msra.mxu0 0
    %86 = vmatprep.subr.bf16.mxu0 0
    %87 = vmatpush1.bf16.msra.mxu0 0
    %88 = vmatprep.mubr.bf16.mxu0 0
    %89 = vmatmul.mubr.bf16.gmra.mrb[0].mxu0 %v54
    %v90 = vpop.f32.mrb[0].mxu0
    %v91 = vadd.f32 %v33, %v90
    %v92 = vpop.f32.mrb[0].mxu0
    %v93 = vpop.f32.mrb[0].mxu0
    %v94 = vadd.f32 %v33, %v93
    %v95 = vpop.f32.mrb[0].mxu0
    %96 = vdwg.mxu0
    %v97 = vmul.f32 %v91, 0.5
    %v98 = vmul.f32 %v94, 0.5
    %v99 = vmul.f32 %v91, 0.70710677
    %v100 = vmul.f32 %v94, 0.70710677
    %v101 = verf.f32.pop %v99
    %v102 = verf.f32.pop %v100
    %v103 = vadd.f32 %v101, 1.0
    %v104 = vadd.f32 %v102, 1.0
    %v105 = vmul.f32 %v97, %v103
    %v106 = vmul.f32 %v98, %v104
    %v107 = vpack.c.bf16 %v106, %v105
    %v108 = vld [vmem:[%s3] sm:$0xf]
    %v109 = vld [vmem:[%s3 + $0x4] sm:$0xf]
    %v110 = vld [vmem:[%s3 + $0x8] sm:$0xf]
    %v111 = vld [vmem:[%s3 + $0xc] sm:$0xf]
    %v112 = vld [vmem:[%s3 + $0x10] sm:$0xf]
    %v113 = vld [vmem:[%s3 + $0x14] sm:$0xf]
    %v114 = vld [vmem:[%s3 + $0x18] sm:$0xf]
    %v115 = vld [vmem:[%s3 + $0x1c] sm:$0xf]
    %v116 = vld [vmem:[%s3 + $0x20] sm:$0xf]
    %v117 = vld [vmem:[%s3 + $0x24] sm:$0xf]
    %v118 = vld [vmem:[%s3 + $0x28] sm:$0xf]
    %v119 = vld [vmem:[%s3 + $0x2c] sm:$0xf]
    %v120 = vld [vmem:[%s3 + $0x30] sm:$0xf]
    %v121 = vld [vmem:[%s3 + $0x34] sm:$0xf]
    %v122 = vld [vmem:[%s3 + $0x38] sm:$0xf]
    %v123 = vld [vmem:[%s3 + $0x3c] sm:$0xf]
    %v124 = vld [vmem:[%s4] sm:$0x1]
    %v126 = vlaneseq
    %v127 = vshrl.u32 %v126, 7
    %v128 = vsub.s32 0, %v127
    %v129 = vrot.slane %v124, %v128
    %v147 = vunpack.c.l.b16 %v108
    %v148 = vunpack.c.l.b16 %v109
    %v149 = vunpack.c.l.b16 %v110
    %v150 = vunpack.c.l.b16 %v111
    %v151 = vunpack.c.l.b16 %v112
    %v152 = vunpack.c.l.b16 %v113
    %v153 = vunpack.c.l.b16 %v114
    %v154 = vunpack.c.l.b16 %v115
    %v155 = vunpack.c.l.b16 %v116
    %v156 = vunpack.c.l.b16 %v117
    %v157 = vunpack.c.l.b16 %v118
    %v158 = vunpack.c.l.b16 %v119
    %v159 = vunpack.c.l.b16 %v120
    %v160 = vunpack.c.l.b16 %v121
    %v161 = vunpack.c.l.b16 %v122
    %v162 = vunpack.c.l.b16 %v123
    %v163 = vpack.c.b16 %v148, %v147
    %v164 = vpack.c.b16 %v150, %v149
    %v165 = vpack.c.b16 %v152, %v151
    %v166 = vpack.c.b16 %v154, %v153
    %v167 = vpack.c.b16 %v156, %v155
    %v168 = vpack.c.b16 %v158, %v157
    %v169 = vpack.c.b16 %v160, %v159
    %v170 = vpack.c.b16 %v162, %v161
    %179 = vmatprep.subr.bf16.mxu0 0
    %180 = vmatpush1.bf16.msra.mxu0 %v163
    %181 = vmatprep.subr.bf16.mxu0 0
    %182 = vmatpush1.bf16.msra.mxu0 %v164
    %183 = vmatprep.subr.bf16.mxu0 0
    %184 = vmatpush1.bf16.msra.mxu0 %v165
    %185 = vmatprep.subr.bf16.mxu0 0
    %186 = vmatpush1.bf16.msra.mxu0 %v166
    %187 = vmatprep.subr.bf16.mxu0 0
    %188 = vmatpush1.bf16.msra.mxu0 %v167
    %189 = vmatprep.subr.bf16.mxu0 0
    %190 = vmatpush1.bf16.msra.mxu0 %v168
    %191 = vmatprep.subr.bf16.mxu0 0
    %192 = vmatpush1.bf16.msra.mxu0 %v169
    %193 = vmatprep.subr.bf16.mxu0 0
    %194 = vmatpush1.bf16.msra.mxu0 %v170
    %195 = vmatprep.subr.bf16.mxu0 0
    %196 = vmatpush1.bf16.msra.mxu0 0
    %197 = vmatprep.subr.bf16.mxu0 0
    %198 = vmatpush1.bf16.msra.mxu0 0
    %199 = vmatprep.subr.bf16.mxu0 0
    %200 = vmatpush1.bf16.msra.mxu0 0
    %201 = vmatprep.subr.bf16.mxu0 0
    %202 = vmatpush1.bf16.msra.mxu0 0
    %203 = vmatprep.subr.bf16.mxu0 0
    %204 = vmatpush1.bf16.msra.mxu0 0
    %205 = vmatprep.subr.bf16.mxu0 0
    %206 = vmatpush1.bf16.msra.mxu0 0
    %207 = vmatprep.subr.bf16.mxu0 0
    %208 = vmatpush1.bf16.msra.mxu0 0
    %209 = vmatprep.subr.bf16.mxu0 0
    %210 = vmatpush1.bf16.msra.mxu0 0
    %211 = vmatprep.mubr.bf16.mxu0 0
    %212 = vmatmul.mubr.bf16.gmra.mrb[0].mxu0 %v107
    %v213 = vpop.f32.mrb[0].mxu0
    %v214 = vadd.f32 %v129, %v213
    %v215 = vpop.f32.mrb[0].mxu0
    %v216 = vpop.f32.mrb[0].mxu0
    %v217 = vadd.f32 %v129, %v216
    %v218 = vpop.f32.mrb[0].mxu0
    %219 = vdwg.mxu0
    %220 = vst.msk [vmem:[#allocation2] sm:$0xff] %vm52, %v214
    %221 = vst.msk [vmem:[#allocation2 + $0x8] sm:$0xff] %vm52, %v217
    // Predicated region
    $region22: #{mlp_forward.1} parent=1 // pred_check
      _
    $region23: #{mlp_forward.1} parent=1 // pred_check_branch
      %223 = sbr.rel (0) target = $region25
    $region24: #{mlp_forward.1} parent=1 // pred_region
      %s225 = ssub.s32 256, 256
      %226 = vsyncadd [#allocation3], %s225
      %s227 = sshll.u32 [#allocation2], 4
      %s228 = int_to_ptr.vmem [resolvable:$true] %s227
      %233 = dma.vmem_to_hbm [thread:$0]  %s228, 256, %s5, [#allocation3], 128, 128, 8
    $region25: #{mlp_forward.1} parent=1 // pred_fallthru
      _
    // Predicated region
    $region26: #{mlp_forward.1} parent=1 // pred_check
      _
    $region27: #{mlp_forward.1} parent=1 // pred_check_branch
      %235 = sbr.rel (0) target = $region29
    $region28: #{mlp_forward.1} parent=1 // pred_region
      %236 = dma.done [#allocation3], 256
    $region29: #{mlp_forward.1} parent=1 // pred_fallthru
      _
    %237 = vsyncpa [#allocation3], 1

</llo_original>
